<compile_context>
chip_gen: v6e
topology: v6e:2x2x1
jax: 0.10.0
libtpu: 0.0.40
codegen_flags: <defaults>
</compile_context>

<pallas_src>
import functools

import jax
import jax.numpy as jnp
from jax.experimental import pallas as pl
from jax.experimental.pallas import tpu as pltpu

LANE = 128
SUBLANE = 8


def _round_up(x: int, m: int) -> int:
    return ((x + m - 1) // m) * m


def policy_kernel(xT_ref, w1t_ref, b1t_ref, w2t_ref, b2t_ref, out_ref):
    """One batch tile, transposed: batch on lanes, features/actions on sublanes.

    xT:  (S, TB)     f32   state^T tile
    w1t: (H, S)      f32   first-layer weight, transposed (VMEM-resident)
    b1t: (H, 1)      f32
    w2t: (A_pad, H)  bf16  second-layer weight, transposed; rows >= A are 0
    b2t: (A_pad, 1)  f32   rows >= A are -1e30 so softmax ignores them
    out: (A_pad, TB) f32   probs^T
    """
    xT = xT_ref[...]
    w1t = w1t_ref[...]
    s_dim = xT.shape[0]

    # ---- Layer 1 + ReLU (transposed): K = S is tiny, so do S broadcast-FMA
    # steps on the VPU instead of a ~97%-padded MXU pass.
    hT = b1t_ref[...]                        # (H, 1); broadcasts up on first add
    for k in range(s_dim):                   # static unroll (S is small, e.g. 4)
        hT = hT + w1t[:, k : k + 1] * xT[k : k + 1, :]
    hT = jnp.maximum(hT, 0.0)                # (H, TB)

    # ---- Layer 2 on the MXU: (A_pad, H) @ (H, TB), bf16 in / f32 accumulate.
    logitsT = (
        jnp.dot(
            w2t_ref[...],
            hT.astype(jnp.bfloat16),
            preferred_element_type=jnp.float32,
        )
        + b2t_ref[...]
    )                                        # (A_pad, TB)

    # ---- Softmax over the small, dense action axis (sublanes). Padded action
    # rows carry a -1e30 bias, so their exp() is exactly 0 and they do not
    # affect the max or the sum. Exact divide via one (1, TB) f32 reciprocal.
    m = jnp.max(logitsT, axis=0, keepdims=True)           # (1, TB)
    e = jnp.exp(logitsT - m)                               # (A_pad, TB)
    inv = 1.0 / jnp.sum(e, axis=0, keepdims=True)          # (1, TB)
    out_ref[...] = (e * inv).astype(out_ref.dtype)


@functools.partial(jax.jit, static_argnames=("block_b",))
def policy_network_forward(state, w1, b1, w2, b2, *, block_b=512):
    """probs = softmax(relu(state @ w1 + b1) @ w2 + b2); weights are [in, out]."""
    B, S = state.shape
    H = w1.shape[1]
    A = w2.shape[1]

    # Action dim padded to one sublane group (8). Padded w2 rows are zero and
    # padded b2 rows are -1e30 (kept in f32), so softmax assigns them exactly 0.
    A_pad = _round_up(max(A, 1), SUBLANE)
    w1t = w1.astype(jnp.float32).T                                    # (H, S)
    b1t = b1.astype(jnp.float32).reshape(H, 1)                        # (H, 1)
    w2t = (
        jnp.zeros((A_pad, H), jnp.float32)
        .at[:A]
        .set(w2.astype(jnp.float32).T)
        .astype(jnp.bfloat16)                                         # (A_pad, H)
    )
    b2t = (
        jnp.full((A_pad, 1), -1e30, jnp.float32)
        .at[:A, 0]
        .set(b2.astype(jnp.float32).reshape(A))                       # (A_pad, 1)
    )

    # Batch sits on the lane axis, so tiles are lane-dense multiples of 128.
    # block_b=512 at B=1024 -> grid=(2,): one tile per v7x TensorCore and only
    # two grid-step overheads on v5e/v6e.
    TB = _round_up(min(block_b, _round_up(B, LANE)), LANE)
    Bp = pl.cdiv(B, TB) * TB
    stateT = state.astype(jnp.float32).T                              # (S, B)
    if Bp != B:
        stateT = jnp.zeros((S, Bp), jnp.float32).at[:, :B].set(stateT)

    grid = (Bp // TB,)

    # Advisory cost hint, consistent with the slim transposed footprint.
    cost = pl.CostEstimate(
        flops=2 * Bp * (S * H + H * A_pad) + 6 * Bp * A_pad,
        transcendentals=Bp * A_pad,
        bytes_accessed=(
            4 * S * Bp            # state^T reads
            + 4 * (H * S + H)     # w1^T, b1^T (read once, VMEM-resident)
            + 2 * A_pad * H       # w2^T (bf16)
            + 4 * A_pad           # b2^T
            + 4 * A_pad * Bp      # probs^T writes
        ),
    )

    out = pl.pallas_call(
        policy_kernel,
        out_shape=jax.ShapeDtypeStruct((A_pad, Bp), jnp.float32),
        grid=grid,
        in_specs=[
            pl.BlockSpec((S, TB), lambda i: (0, i)),      # state^T: batch-tiled on lanes
            pl.BlockSpec((H, S), lambda i: (0, 0)),       # w1^T: VMEM-resident
            pl.BlockSpec((H, 1), lambda i: (0, 0)),       # b1^T: VMEM-resident
            pl.BlockSpec((A_pad, H), lambda i: (0, 0)),   # w2^T (bf16): resident
            pl.BlockSpec((A_pad, 1), lambda i: (0, 0)),   # b2^T: resident
        ],
        out_specs=pl.BlockSpec((A_pad, TB), lambda i: (0, i)),
        compiler_params=pltpu.CompilerParams(
            dimension_semantics=("parallel",),  # batch tiles -> both v7x TCs
        ),
        cost_estimate=cost,
    )(stateT, w1t, b1t, w2t, b2t)

    # probs^T (A_pad, Bp) -> (B, A); slice + transpose is a tiny XLA op.
    return out[:A, :B].T


def init_params(key, state_dim, action_dim, hidden_dim=128):
    # Deterministic synthetic init mimicking PyTorch's U(-1/sqrt(fan_in), 1/sqrt(fan_in)).
    k1, k2, k3, k4 = jax.random.split(key, 4)
    lim1 = 1.0 / jnp.sqrt(jnp.float32(state_dim))
    lim2 = 1.0 / jnp.sqrt(jnp.float32(hidden_dim))
    w1 = jax.random.uniform(k1, (state_dim, hidden_dim), jnp.float32, -lim1, lim1)
    b1 = jax.random.uniform(k2, (1, hidden_dim), jnp.float32, -lim1, lim1)
    w2 = jax.random.uniform(k3, (hidden_dim, action_dim), jnp.float32, -lim2, lim2)
    b2 = jax.random.uniform(k4, (1, action_dim), jnp.float32, -lim2, lim2)
    return w1, b1, w2, b2


if __name__ == "__main__":
    # CartPole-like dims; batch sized so grid=(2,) (one 512-row tile per v7x TC).
    batch, state_dim, action_dim, hidden_dim = 1024, 4, 2, 128
    block_b = 512

    key = jax.random.PRNGKey(0)
    kx, kp = jax.random.split(key)
    state = jax.random.normal(kx, (batch, state_dim), jnp.float32)
    w1, b1, w2, b2 = init_params(kp, state_dim, action_dim, hidden_dim)

    probs = policy_network_forward(state, w1, b1, w2, b2, block_b=block_b)
    probs = jax.block_until_ready(probs)

    # Reference in plain JAX (all f32). Kernel layer 2 is bf16 with f32
    # accumulation, so tolerances cover ~2^-9-scale logit rounding.
    h_ref = jnp.maximum(state @ w1 + b1, 0.0)
    logits_ref = h_ref @ w2 + b2
    probs_ref = jax.nn.softmax(logits_ref, axis=-1)

    assert probs.shape == (batch, action_dim)
    assert jnp.allclose(probs, probs_ref, atol=2e-3, rtol=2e-3)
    assert jnp.allclose(jnp.sum(probs, axis=-1), 1.0, atol=1e-4)  # exact divide

    # Tiny, non-tile-aligned batch exercises the lane-padding path.
    small = state[:7]
    probs_small = jax.block_until_ready(
        policy_network_forward(small, w1, b1, w2, b2, block_b=block_b)
    )
    assert probs_small.shape == (7, action_dim)
    assert jnp.allclose(probs_small, probs_ref[:7], atol=2e-3, rtol=2e-3)

    print("KERNEL_OK")
</pallas_src>

<mosaic_0001>
module attributes {stable_mosaic.version = 11 : i64} {
  func.func @policy_kernel(%arg0: i32, %arg1: memref<4x512xf32, #tpu.memory_space<vmem>>, %arg2: memref<128x4xf32, #tpu.memory_space<vmem>>, %arg3: memref<128x1xf32, #tpu.memory_space<vmem>>, %arg4: memref<8x128xbf16, #tpu.memory_space<vmem>>, %arg5: memref<8x1xf32, #tpu.memory_space<vmem>>, %arg6: memref<8x512xf32, #tpu.memory_space<vmem>>) attributes {dimension_semantics = [#tpu.dimension_semantics<parallel>], iteration_bounds = array<i64: 2>, scalar_prefetch = 0 : i64, scratch_operands = 0 : i64, tpu.core_type = #tpu.core_type<tc>, window_params = [{transform_indices = @transform_0, window_bounds = array<i64: 4, 512>}, {pipeline_mode = #tpu.pipeline_mode<synchronous>, transform_indices = @transform_1, window_bounds = array<i64: 128, 4>}, {pipeline_mode = #tpu.pipeline_mode<synchronous>, transform_indices = @transform_2, window_bounds = array<i64: 128, 1>}, {pipeline_mode = #tpu.pipeline_mode<synchronous>, transform_indices = @transform_3, window_bounds = array<i64: 8, 128>}, {pipeline_mode = #tpu.pipeline_mode<synchronous>, transform_indices = @transform_4, window_bounds = array<i64: 8, 1>}, {transform_indices = @transform_5, window_bounds = array<i64: 8, 512>}]} {
    %c0 = arith.constant 0 : index
    %c0_0 = arith.constant 0 : index
    %0 = vector.load %arg1[%c0, %c0_0] : memref<4x512xf32, #tpu.memory_space<vmem>>, vector<4x512xf32>
    %c0_1 = arith.constant 0 : index
    %c0_2 = arith.constant 0 : index
    %1 = vector.load %arg2[%c0_1, %c0_2] : memref<128x4xf32, #tpu.memory_space<vmem>>, vector<128x4xf32>
    %c0_3 = arith.constant 0 : index
    %c0_4 = arith.constant 0 : index
    %2 = vector.load %arg3[%c0_3, %c0_4] : memref<128x1xf32, #tpu.memory_space<vmem>>, vector<128x1xf32>
    %3 = vector.extract_strided_slice %1 {offsets = [0, 0], sizes = [128, 1], strides = [1, 1]} : vector<128x4xf32> to vector<128x1xf32>
    %4 = vector.extract_strided_slice %0 {offsets = [0, 0], sizes = [1, 512], strides = [1, 1]} : vector<4x512xf32> to vector<1x512xf32>
    %5 = vector.broadcast %3 : vector<128x1xf32> to vector<128x512xf32>
    %6 = vector.broadcast %4 : vector<1x512xf32> to vector<128x512xf32>
    %7 = arith.mulf %5, %6 : vector<128x512xf32>
    %8 = vector.broadcast %2 : vector<128x1xf32> to vector<128x512xf32>
    %9 = arith.addf %8, %7 : vector<128x512xf32>
    %10 = vector.extract_strided_slice %1 {offsets = [0, 1], sizes = [128, 1], strides = [1, 1]} : vector<128x4xf32> to vector<128x1xf32>
    %11 = vector.extract_strided_slice %0 {offsets = [1, 0], sizes = [1, 512], strides = [1, 1]} : vector<4x512xf32> to vector<1x512xf32>
    %12 = vector.broadcast %10 : vector<128x1xf32> to vector<128x512xf32>
    %13 = vector.broadcast %11 : vector<1x512xf32> to vector<128x512xf32>
    %14 = arith.mulf %12, %13 : vector<128x512xf32>
    %15 = arith.addf %9, %14 : vector<128x512xf32>
    %16 = vector.extract_strided_slice %1 {offsets = [0, 2], sizes = [128, 1], strides = [1, 1]} : vector<128x4xf32> to vector<128x1xf32>
    %17 = vector.extract_strided_slice %0 {offsets = [2, 0], sizes = [1, 512], strides = [1, 1]} : vector<4x512xf32> to vector<1x512xf32>
    %18 = vector.broadcast %16 : vector<128x1xf32> to vector<128x512xf32>
    %19 = vector.broadcast %17 : vector<1x512xf32> to vector<128x512xf32>
    %20 = arith.mulf %18, %19 : vector<128x512xf32>
    %21 = arith.addf %15, %20 : vector<128x512xf32>
    %22 = vector.extract_strided_slice %1 {offsets = [0, 3], sizes = [128, 1], strides = [1, 1]} : vector<128x4xf32> to vector<128x1xf32>
    %23 = vector.extract_strided_slice %0 {offsets = [3, 0], sizes = [1, 512], strides = [1, 1]} : vector<4x512xf32> to vector<1x512xf32>
    %24 = vector.broadcast %22 : vector<128x1xf32> to vector<128x512xf32>
    %25 = vector.broadcast %23 : vector<1x512xf32> to vector<128x512xf32>
    %26 = arith.mulf %24, %25 : vector<128x512xf32>
    %27 = arith.addf %21, %26 : vector<128x512xf32>
    %cst = arith.constant 0.000000e+00 : f32
    %28 = vector.broadcast %cst : f32 to vector<128x512xf32>
    %29 = arith.maximumf %27, %28 : vector<128x512xf32>
    %c0_5 = arith.constant 0 : index
    %c0_6 = arith.constant 0 : index
    %30 = vector.load %arg4[%c0_5, %c0_6] : memref<8x128xbf16, #tpu.memory_space<vmem>>, vector<8x128xbf16>
    %31 = arith.truncf %29 : vector<128x512xf32> to vector<128x512xbf16>
    %cst_7 = arith.constant dense<0.000000e+00> : vector<8x512xf32>
    %32 = tpu.matmul %30, %31, %cst_7 {dimension_numbers = #tpu.dot_dimension_numbers<[1], [0], [0], [1], [0, 0, 1, 1], [], []>} : vector<8x128xbf16>, vector<128x512xbf16>, vector<8x512xf32> -> vector<8x512xf32>
    %c0_8 = arith.constant 0 : index
    %c0_9 = arith.constant 0 : index
    %33 = vector.load %arg5[%c0_8, %c0_9] : memref<8x1xf32, #tpu.memory_space<vmem>>, vector<8x1xf32>
    %34 = vector.broadcast %33 : vector<8x1xf32> to vector<8x512xf32>
    %35 = arith.addf %32, %34 : vector<8x512xf32>
    %cst_10 = arith.constant dense<0xFF800000> : vector<512xf32>
    %36 = vector.multi_reduction <maximumf>, %35, %cst_10 [0] : vector<8x512xf32> to vector<512xf32>
    %37 = vector.shape_cast %36 : vector<512xf32> to vector<1x512xf32>
    %38 = vector.broadcast %37 : vector<1x512xf32> to vector<8x512xf32>
    %39 = arith.subf %35, %38 : vector<8x512xf32>
    %40 = math.exp %39 : vector<8x512xf32>
    %cst_11 = arith.constant dense<0.000000e+00> : vector<512xf32>
    %41 = vector.multi_reduction <add>, %40, %cst_11 [0] : vector<8x512xf32> to vector<512xf32>
    %42 = vector.shape_cast %41 : vector<512xf32> to vector<1x512xf32>
    %cst_12 = arith.constant 1.000000e+00 : f32
    %43 = vector.broadcast %cst_12 : f32 to vector<1x512xf32>
    %44 = arith.divf %43, %42 : vector<1x512xf32>
    %45 = vector.broadcast %44 : vector<1x512xf32> to vector<8x512xf32>
    %46 = arith.mulf %40, %45 : vector<8x512xf32>
    %c0_13 = arith.constant 0 : index
    %c0_14 = arith.constant 0 : index
    %47 = vector.load %arg6[%c0_13, %c0_14] : memref<8x512xf32, #tpu.memory_space<vmem>>, vector<8x512xf32>
    tpu.vector_store %arg6[%c0_13, %c0_14], %46 {strides = array<i32>} : memref<8x512xf32, #tpu.memory_space<vmem>>, vector<8x512xf32>,
    return
  }
  func.func @transform_0(%arg0: i32) -> (i32, i32) {
    %c0_i32 = arith.constant 0 : i32
    %c0_i32_0 = arith.constant 0 : i32
    return %c0_i32, %arg0 : i32, i32
  }
  func.func @transform_1(%arg0: i32) -> (i32, i32) {
    %c0_i32 = arith.constant 0 : i32
    %c0_i32_0 = arith.constant 0 : i32
    %c0_i32_1 = arith.constant 0 : i32
    return %c0_i32, %c0_i32_0 : i32, i32
  }
  func.func @transform_2(%arg0: i32) -> (i32, i32) {
    %c0_i32 = arith.constant 0 : i32
    %c0_i32_0 = arith.constant 0 : i32
    %c0_i32_1 = arith.constant 0 : i32
    return %c0_i32, %c0_i32_0 : i32, i32
  }
  func.func @transform_3(%arg0: i32) -> (i32, i32) {
    %c0_i32 = arith.constant 0 : i32
    %c0_i32_0 = arith.constant 0 : i32
    %c0_i32_1 = arith.constant 0 : i32
    return %c0_i32, %c0_i32_0 : i32, i32
  }
  func.func @transform_4(%arg0: i32) -> (i32, i32) {
    %c0_i32 = arith.constant 0 : i32
    %c0_i32_0 = arith.constant 0 : i32
    %c0_i32_1 = arith.constant 0 : i32
    return %c0_i32, %c0_i32_0 : i32, i32
  }
  func.func @transform_5(%arg0: i32) -> (i32, i32) {
    %c0_i32 = arith.constant 0 : i32
    %c0_i32_0 = arith.constant 0 : i32
    return %c0_i32, %arg0 : i32, i32
  }
}

</mosaic_0001>

<llo_original>
// kernel: policy_network_forward.1
$region0: #{policy_network_forward.1}
  #allocation0 [shape = 'u32[]', space=smem, size = 0x4, offset = 0x4, fixed_abs, tag = 'smem constant byte address 0x4 - core index']
  #allocation1 [shape = 'u32[144,128]{1,0:T(1,128)}', space=vmem, size = 0x12000, scoped, tag = 'internal scratch']
  %s0 = inlined_call_operand.vmem [shape: f32[4,1024], index: 0, kind: input, shape index: {}]
  %s1 = inlined_call_operand.vmem [shape: f32[128,4], index: 1, kind: input, shape index: {}]
  %s2 = inlined_call_operand.vmem [shape: f32[128,1], index: 2, kind: input, shape index: {}]
  %s3 = inlined_call_operand.vmem [shape: bf16[8,128], index: 3, kind: input, shape index: {}]
  %s4 = inlined_call_operand.vmem [shape: f32[8,1], index: 4, kind: input, shape index: {}]
  %s5 = inlined_call_operand.vmem [shape: f32[8,1024], index: 5, kind: output, shape index: {}]
  %s6 = sld [smem:[#allocation0]]
  $region53: #{policy_network_forward.1} parent=0
    _
  %s8 = ssub.s32 1, %s6
  %s9 = scalar_select 0, %s8, %s6
  loop: start=0, step=1, limit=4
  $region2: #{policy_network_forward.1} parent=0 // loop_pre_header
    _
  $region3: #{policy_network_forward.1} parent=0 // loop_header
    %s11 = sphi 0, %s15
    %p12 = scmp.ge.s32.totalorder %s11, 4
    %s21 = sphi 0, %s23
    %s24 = sphi 0, %s21
    %s25 = sphi 0, %s24
    %s41 = sphi 0, %s25
    %s45 = sphi 0, %s45
    %s47 = sphi 0, %s45
    %s48 = sphi 0, %s47
    %s62 = sphi 0, %s48
    %s66 = sphi 0, %s66
    %s68 = sphi 0, %s66
    %s69 = sphi 0, %s68
    %s83 = sphi 0, %s69
    %s87 = sphi 0, %s87
    %s89 = sphi 0, %s87
    %s90 = sphi 0, %s89
    %s104 = sphi 0, %s90
    %s108 = sphi 0, %s108
    %s110 = sphi 0, %s108
    %s111 = sphi 0, %s110
    %s125 = sphi 0, %s111
    %s131 = sphi 0, %s133
    %s134 = sphi 0, %s131
    %s135 = sphi 0, %s134
    %s151 = sphi 0, %s135
  $region4: #{policy_network_forward.1} parent=0 // loop_header_branch
    %14 = sbr.rel (%p12) target = $region8
  $region5: #{policy_network_forward.1} parent=0 // loop_body
    %s16 = ssub.s32 %s11, 1
    %s17 = ssub.s32 %s11, 2
    %s18 = sadd.s32 %s11, 1
    %s19 = ssub.s32 %s11, %s18
    %p20 = scmp.eq.s32.totalorder %s19, 0
    %s22 = sadd.s32 %s21, 1
    %s23 = scalar_select %p20, %s21, %s22
    %p26 = pneg %p20
    %p27 = scmp.eq.s32.totalorder %s11, 1
    %p28 = por %p26, %p27
    %p29 = scmp.ne.s32.totalorder %s21, %s24
    %p30 = scmp.eq.s32.totalorder %s11, 0
    %p31 = por %p29, %p30
    %p32 = scmp.ne.s32.totalorder %s21, %s24
    %p33 = scmp.eq.s32.totalorder %s16, 1
    %p34 = por %p32, %p33
    %p35 = scmp.ne.s32.totalorder %s24, %s25
    %p36 = scmp.eq.s32.totalorder %s16, 0
    %p37 = por %p35, %p36
    %p38 = scmp.ne.s32.totalorder %s24, %s25
    %p39 = scmp.eq.s32.totalorder %s17, 1
    %p40 = por %p38, %p39
    %p42 = scmp.ne.s32.totalorder %s25, %s41
    %p43 = scmp.eq.s32.totalorder %s17, 0
    %p44 = por %p42, %p43
    %s46 = sadd.s32 %s45, 1
    %p49 = scmp.eq.s32.totalorder %s11, 1
    %p50 = scmp.ne.s32.totalorder %s45, %s47
    %p51 = scmp.eq.s32.totalorder %s11, 0
    %p52 = por %p50, %p51
    %p53 = scmp.ne.s32.totalorder %s45, %s47
    %p54 = scmp.eq.s32.totalorder %s16, 1
    %p55 = por %p53, %p54
    %p56 = scmp.ne.s32.totalorder %s47, %s48
    %p57 = scmp.eq.s32.totalorder %s16, 0
    %p58 = por %p56, %p57
    %p59 = scmp.ne.s32.totalorder %s47, %s48
    %p60 = scmp.eq.s32.totalorder %s17, 1
    %p61 = por %p59, %p60
    %p63 = scmp.ne.s32.totalorder %s48, %s62
    %p64 = scmp.eq.s32.totalorder %s17, 0
    %p65 = por %p63, %p64
    %s67 = sadd.s32 %s66, 1
    %p70 = scmp.eq.s32.totalorder %s11, 1
    %p71 = scmp.ne.s32.totalorder %s66, %s68
    %p72 = scmp.eq.s32.totalorder %s11, 0
    %p73 = por %p71, %p72
    %p74 = scmp.ne.s32.totalorder %s66, %s68
    %p75 = scmp.eq.s32.totalorder %s16, 1
    %p76 = por %p74, %p75
    %p77 = scmp.ne.s32.totalorder %s68, %s69
    %p78 = scmp.eq.s32.totalorder %s16, 0
    %p79 = por %p77, %p78
    %p80 = scmp.ne.s32.totalorder %s68, %s69
    %p81 = scmp.eq.s32.totalorder %s17, 1
    %p82 = por %p80, %p81
    %p84 = scmp.ne.s32.totalorder %s69, %s83
    %p85 = scmp.eq.s32.totalorder %s17, 0
    %p86 = por %p84, %p85
    %s88 = sadd.s32 %s87, 1
    %p91 = scmp.eq.s32.totalorder %s11, 1
    %p92 = scmp.ne.s32.totalorder %s87, %s89
    %p93 = scmp.eq.s32.totalorder %s11, 0
    %p94 = por %p92, %p93
    %p95 = scmp.ne.s32.totalorder %s87, %s89
    %p96 = scmp.eq.s32.totalorder %s16, 1
    %p97 = por %p95, %p96
    %p98 = scmp.ne.s32.totalorder %s89, %s90
    %p99 = scmp.eq.s32.totalorder %s16, 0
    %p100 = por %p98, %p99
    %p101 = scmp.ne.s32.totalorder %s89, %s90
    %p102 = scmp.eq.s32.totalorder %s17, 1
    %p103 = por %p101, %p102
    %p105 = scmp.ne.s32.totalorder %s90, %s104
    %p106 = scmp.eq.s32.totalorder %s17, 0
    %p107 = por %p105, %p106
    %s109 = sadd.s32 %s108, 1
    %p112 = scmp.eq.s32.totalorder %s11, 1
    %p113 = scmp.ne.s32.totalorder %s108, %s110
    %p114 = scmp.eq.s32.totalorder %s11, 0
    %p115 = por %p113, %p114
    %p116 = scmp.ne.s32.totalorder %s108, %s110
    %p117 = scmp.eq.s32.totalorder %s16, 1
    %p118 = por %p116, %p117
    %p119 = scmp.ne.s32.totalorder %s110, %s111
    %p120 = scmp.eq.s32.totalorder %s16, 0
    %p121 = por %p119, %p120
    %p122 = scmp.ne.s32.totalorder %s110, %s111
    %p123 = scmp.eq.s32.totalorder %s17, 1
    %p124 = por %p122, %p123
    %p126 = scmp.ne.s32.totalorder %s111, %s125
    %p127 = scmp.eq.s32.totalorder %s17, 0
    %p128 = por %p126, %p127
    %s129 = ssub.s32 %s11, %s18
    %p130 = scmp.eq.s32.totalorder %s129, 0
    %s132 = sadd.s32 %s131, 1
    %s133 = scalar_select %p130, %s131, %s132
    %p136 = pneg %p130
    %p137 = scmp.eq.s32.totalorder %s11, 1
    %p138 = por %p136, %p137
    %p139 = scmp.ne.s32.totalorder %s131, %s134
    %p140 = scmp.eq.s32.totalorder %s11, 0
    %p141 = por %p139, %p140
    %p142 = scmp.ne.s32.totalorder %s131, %s134
    %p143 = scmp.eq.s32.totalorder %s16, 1
    %p144 = por %p142, %p143
    %p145 = scmp.ne.s32.totalorder %s134, %s135
    %p146 = scmp.eq.s32.totalorder %s16, 0
    %p147 = por %p145, %p146
    %p148 = scmp.ne.s32.totalorder %s134, %s135
    %p149 = scmp.eq.s32.totalorder %s17, 1
    %p150 = por %p148, %p149
    %p152 = scmp.ne.s32.totalorder %s135, %s151
    %p153 = scmp.eq.s32.totalorder %s17, 0
    %p154 = por %p152, %p153
    %p155 = scmp.le.s32.totalorder 1, %s11
    %p156 = scmp.lt.s32.totalorder %s11, 3
    %p157 = pnand %p155, %p156
    %p158 = pneg %p157
    // Predicated region
    $region9: #{policy_network_forward.1} parent=5 // pred_check
      _
    $region10: #{policy_network_forward.1} parent=5 // pred_check_branch
      %160 = sbr.rel (%p157) target = $region12
    $region11: #{policy_network_forward.1} parent=5 // pred_region
      %s161 = ssub.s32 %s11, 1
      // Predicated region
      $region13: #{policy_network_forward.1} parent=11 // pred_check
        %p162 = pneg %p58
      $region14: #{policy_network_forward.1} parent=11 // pred_check_branch
        %164 = sbr.rel (%p162) target = $region16
      $region15: #{policy_network_forward.1} parent=11 // pred_region
        _
      $region16: #{policy_network_forward.1} parent=11 // pred_fallthru
        _
      // Predicated region
      $region17: #{policy_network_forward.1} parent=11 // pred_check
        %p165 = pneg %p79
      $region18: #{policy_network_forward.1} parent=11 // pred_check_branch
        %167 = sbr.rel (%p165) target = $region20
      $region19: #{policy_network_forward.1} parent=11 // pred_region
        _
      $region20: #{policy_network_forward.1} parent=11 // pred_fallthru
        _
      // Predicated region
      $region21: #{policy_network_forward.1} parent=11 // pred_check
        %p168 = pneg %p100
      $region22: #{policy_network_forward.1} parent=11 // pred_check_branch
        %170 = sbr.rel (%p168) target = $region24
      $region23: #{policy_network_forward.1} parent=11 // pred_region
        _
      $region24: #{policy_network_forward.1} parent=11 // pred_fallthru
        _
      // Predicated region
      $region25: #{policy_network_forward.1} parent=11 // pred_check
        %p171 = pneg %p121
      $region26: #{policy_network_forward.1} parent=11 // pred_check_branch
        %173 = sbr.rel (%p171) target = $region28
      $region27: #{policy_network_forward.1} parent=11 // pred_region
        _
      $region28: #{policy_network_forward.1} parent=11 // pred_fallthru
        _
    $region12: #{policy_network_forward.1} parent=5 // pred_fallthru
      _
    %p174 = scmp.lt.s32.totalorder %s11, 2
    // Predicated region
    $region29: #{policy_network_forward.1} parent=5 // pred_check
      %p175 = pneg %p174
    $region30: #{policy_network_forward.1} parent=5 // pred_check_branch
      %177 = sbr.rel (%p175) target = $region32
    $region31: #{policy_network_forward.1} parent=5 // pred_region
      // Predicated region
      $region33: #{policy_network_forward.1} parent=31 // pred_check
        %p178 = pneg %p31
      $region34: #{policy_network_forward.1} parent=31 // pred_check_branch
        %180 = sbr.rel (%p178) target = $region36
      $region35: #{policy_network_forward.1} parent=31 // pred_region
        %s181 = smul.u32 4, %s11
        %p182 = scmp.lt.s32.totalorder %s181, 7
        %s183 = scalar_select %p182, %s181, 7
        %s184 = smul.addr %s183, 4
        %s185 = scalar_lea.vmem %s0, %s184
        %s186 = smul.u32 4, %s11
      $region36: #{policy_network_forward.1} parent=31 // pred_fallthru
        _
    $region32: #{policy_network_forward.1} parent=5 // pred_fallthru
      _
    %p187 = scmp.le.s32.totalorder 1, %s11
    %p188 = scmp.lt.s32.totalorder %s11, 3
    %p189 = pnand %p187, %p188
    %p190 = pneg %p189
    // Predicated region
    $region37: #{policy_network_forward.1} parent=5 // pred_check
      _
    $region38: #{policy_network_forward.1} parent=5 // pred_check_branch
      %192 = sbr.rel (%p189) target = $region40
    $region39: #{policy_network_forward.1} parent=5 // pred_region
      %s193 = ssub.s32 %s11, 1
      %s194 = smul.u32 4, %s16
      %p195 = scmp.lt.s32.totalorder %s194, 7
      %s196 = scalar_select %p195, %s194, 7
      %s197 = smul.addr %s196, 4
      %s198 = scalar_lea.vmem %s0, %s197
      %p199 = pneg %p37
      %p200 = pneg %p34
      %p201 = pneg %p58
      %p202 = pneg %p55
      %p203 = pneg %p79
      %p204 = pneg %p76
      %p205 = pneg %p100
      %p206 = pneg %p97
      %p207 = pneg %p121
      %p208 = pneg %p118
      %p209 = pneg %p147
      %p210 = pneg %p144
      %s211 = smul.u32 4, %s16
      %p212 = scmp.lt.s32.totalorder %s211, 7
      %s213 = scalar_select %p212, %s211, 7
      %s214 = smul.addr %s213, 8
      %s215 = scalar_lea.vmem %s5, %s214
      %s216 = smul.u32 4, %s16
      %p217 = scmp.lt.s32.totalorder %s216, 7
      %s218 = scalar_select %p217, %s216, 7
      %s219 = smul.addr %s218, 4
      %s220 = scalar_lea.vmem %s0, %s219
      %s221 = smul.u32 4, %s16
      %s222 = smul.u32 4, %s16
      %p223 = scmp.lt.s32.totalorder %s222, 7
      %s224 = scalar_select %p223, %s222, 7
      %s225 = smul.addr %s224, 8
      %s226 = scalar_lea.vmem %s5, %s225
      %s227 = smul.u32 4, %s16
      %v229 = vld [vmem:[%s220] sm:$0xff]
      %v230 = vld [vmem:[%s220 + $0x8] sm:$0xff]
      %v231 = vld [vmem:[%s1] sm:$0xff]
      %v232 = vld [vmem:[%s1 + $0x8] sm:$0xff]
      %v233 = vld [vmem:[%s1 + $0x10] sm:$0xff]
      %v234 = vld [vmem:[%s1 + $0x18] sm:$0xff]
      %v235 = vld [vmem:[%s1 + $0x20] sm:$0xff]
      %v236 = vld [vmem:[%s1 + $0x28] sm:$0xff]
      %v237 = vld [vmem:[%s1 + $0x30] sm:$0xff]
      %v238 = vld [vmem:[%s1 + $0x38] sm:$0xff]
      %v239 = vld [vmem:[%s1 + $0x40] sm:$0xff]
      %v240 = vld [vmem:[%s1 + $0x48] sm:$0xff]
      %v241 = vld [vmem:[%s1 + $0x50] sm:$0xff]
      %v242 = vld [vmem:[%s1 + $0x58] sm:$0xff]
      %v243 = vld [vmem:[%s1 + $0x60] sm:$0xff]
      %v244 = vld [vmem:[%s1 + $0x68] sm:$0xff]
      %v245 = vld [vmem:[%s1 + $0x70] sm:$0xff]
      %v246 = vld [vmem:[%s1 + $0x78] sm:$0xff]
      %v247 = vld [vmem:[%s2] sm:$0xff]
      %v248 = vld [vmem:[%s2 + $0x8] sm:$0xff]
      %v249 = vld [vmem:[%s2 + $0x10] sm:$0xff]
      %v250 = vld [vmem:[%s2 + $0x18] sm:$0xff]
      %v251 = vld [vmem:[%s2 + $0x20] sm:$0xff]
      %v252 = vld [vmem:[%s2 + $0x28] sm:$0xff]
      %v253 = vld [vmem:[%s2 + $0x30] sm:$0xff]
      %v254 = vld [vmem:[%s2 + $0x38] sm:$0xff]
      %v255 = vld [vmem:[%s2 + $0x40] sm:$0xff]
      %v256 = vld [vmem:[%s2 + $0x48] sm:$0xff]
      %v257 = vld [vmem:[%s2 + $0x50] sm:$0xff]
      %v258 = vld [vmem:[%s2 + $0x58] sm:$0xff]
      %v259 = vld [vmem:[%s2 + $0x60] sm:$0xff]
      %v260 = vld [vmem:[%s2 + $0x68] sm:$0xff]
      %v261 = vld [vmem:[%s2 + $0x70] sm:$0xff]
      %v262 = vld [vmem:[%s2 + $0x78] sm:$0xff]
      %264 = vset.pattern.permute.xlu0 0
      %265 = vperm.xlu0 %264, %v231
      %v266 = vpop.permute.xlu0 %265
      %269 = vset.pattern.permute.xlu0 0
      %270 = vperm.xlu0 %269, %v232
      %v271 = vpop.permute.xlu0 %270
      %274 = vset.pattern.permute.xlu0 0
      %275 = vperm.xlu0 %274, %v233
      %v276 = vpop.permute.xlu0 %275
      %279 = vset.pattern.permute.xlu0 0
      %280 = vperm.xlu0 %279, %v234
      %v281 = vpop.permute.xlu0 %280
      %284 = vset.pattern.permute.xlu0 0
      %285 = vperm.xlu0 %284, %v235
      %v286 = vpop.permute.xlu0 %285
      %289 = vset.pattern.permute.xlu0 0
      %290 = vperm.xlu0 %289, %v236
      %v291 = vpop.permute.xlu0 %290
      %294 = vset.pattern.permute.xlu0 0
      %295 = vperm.xlu0 %294, %v237
      %v296 = vpop.permute.xlu0 %295
      %299 = vset.pattern.permute.xlu0 0
      %300 = vperm.xlu0 %299, %v238
      %v301 = vpop.permute.xlu0 %300
      %304 = vset.pattern.permute.xlu0 0
      %305 = vperm.xlu0 %304, %v239
      %v306 = vpop.permute.xlu0 %305
      %309 = vset.pattern.permute.xlu0 0
      %310 = vperm.xlu0 %309, %v240
      %v311 = vpop.permute.xlu0 %310
      %314 = vset.pattern.permute.xlu0 0
      %315 = vperm.xlu0 %314, %v241
      %v316 = vpop.permute.xlu0 %315
      %319 = vset.pattern.permute.xlu0 0
      %320 = vperm.xlu0 %319, %v242
      %v321 = vpop.permute.xlu0 %320
      %324 = vset.pattern.permute.xlu0 0
      %325 = vperm.xlu0 %324, %v243
      %v326 = vpop.permute.xlu0 %325
      %329 = vset.pattern.permute.xlu0 0
      %330 = vperm.xlu0 %329, %v244
      %v331 = vpop.permute.xlu0 %330
      %334 = vset.pattern.permute.xlu0 0
      %335 = vperm.xlu0 %334, %v245
      %v336 = vpop.permute.xlu0 %335
      %339 = vset.pattern.permute.xlu0 0
      %340 = vperm.xlu0 %339, %v246
      %v341 = vpop.permute.xlu0 %340
      %v345 = vlaneseq
      %v346 = vshrl.u32 %v345, 7
      %v347 = vsub.s32 0, %v346
      %v348 = vrot.slane %v229, %v347
      %v349 = vlaneseq
      %v350 = vshrl.u32 %v349, 7
      %v351 = vsub.s32 4, %v350
      %v352 = vrot.slane %v229, %v351
      %v353 = vlaneseq
      %v354 = vshrl.u32 %v353, 7
      %v355 = vsub.s32 0, %v354
      %v356 = vrot.slane %v230, %v355
      %v357 = vlaneseq
      %v358 = vshrl.u32 %v357, 7
      %v359 = vsub.s32 4, %v358
      %v360 = vrot.slane %v230, %v359
      %v365 = vlaneseq
      %v366 = vshrl.u32 %v365, 7
      %v367 = vsub.s32 0, %v366
      %v368 = vrot.slane %v348, %v367
      %v369 = vlaneseq
      %v370 = vshrl.u32 %v369, 7
      %v371 = vsub.s32 0, %v370
      %v372 = vrot.slane %v352, %v371
      %v373 = vlaneseq
      %v374 = vshrl.u32 %v373, 7
      %v375 = vsub.s32 0, %v374
      %v376 = vrot.slane %v356, %v375
      %v377 = vlaneseq
      %v378 = vshrl.u32 %v377, 7
      %v379 = vsub.s32 0, %v378
      %v380 = vrot.slane %v360, %v379
      %v381 = vmul.f32 %v266, %v368
      %v382 = vmul.f32 %v266, %v372
      %v383 = vmul.f32 %v266, %v376
      %v384 = vmul.f32 %v266, %v380
      %v385 = vmul.f32 %v271, %v368
      %v386 = vmul.f32 %v271, %v372
      %v387 = vmul.f32 %v271, %v376
      %v388 = vmul.f32 %v271, %v380
      %v389 = vmul.f32 %v276, %v368
      %v390 = vmul.f32 %v276, %v372
      %v391 = vmul.f32 %v276, %v376
      %v392 = vmul.f32 %v276, %v380
      %v393 = vmul.f32 %v281, %v368
      %v394 = vmul.f32 %v281, %v372
      %v395 = vmul.f32 %v281, %v376
      %v396 = vmul.f32 %v281, %v380
      %v397 = vmul.f32 %v286, %v368
      %v398 = vmul.f32 %v286, %v372
      %v399 = vmul.f32 %v286, %v376
      %v400 = vmul.f32 %v286, %v380
      %v401 = vmul.f32 %v291, %v368
      %v402 = vmul.f32 %v291, %v372
      %v403 = vmul.f32 %v291, %v376
      %v404 = vmul.f32 %v291, %v380
      %v405 = vmul.f32 %v296, %v368
      %v406 = vmul.f32 %v296, %v372
      %v407 = vmul.f32 %v296, %v376
      %v408 = vmul.f32 %v296, %v380
      %v409 = vmul.f32 %v301, %v368
      %v410 = vmul.f32 %v301, %v372
      %v411 = vmul.f32 %v301, %v376
      %v412 = vmul.f32 %v301, %v380
      %v413 = vmul.f32 %v306, %v368
      %v414 = vmul.f32 %v306, %v372
      %v415 = vmul.f32 %v306, %v376
      %v416 = vmul.f32 %v306, %v380
      %v417 = vmul.f32 %v311, %v368
      %v418 = vmul.f32 %v311, %v372
      %v419 = vmul.f32 %v311, %v376
      %v420 = vmul.f32 %v311, %v380
      %v421 = vmul.f32 %v316, %v368
      %v422 = vmul.f32 %v316, %v372
      %v423 = vmul.f32 %v316, %v376
      %v424 = vmul.f32 %v316, %v380
      %v425 = vmul.f32 %v321, %v368
      %v426 = vmul.f32 %v321, %v372
      %v427 = vmul.f32 %v321, %v376
      %v428 = vmul.f32 %v321, %v380
      %v429 = vmul.f32 %v326, %v368
      %v430 = vmul.f32 %v326, %v372
      %v431 = vmul.f32 %v326, %v376
      %v432 = vmul.f32 %v326, %v380
      %v433 = vmul.f32 %v331, %v368
      %v434 = vmul.f32 %v331, %v372
      %v435 = vmul.f32 %v331, %v376
      %v436 = vmul.f32 %v331, %v380
      %v437 = vmul.f32 %v336, %v368
      %v438 = vmul.f32 %v336, %v372
      %v439 = vmul.f32 %v336, %v376
      %v440 = vmul.f32 %v336, %v380
      %v441 = vmul.f32 %v341, %v368
      %v442 = vmul.f32 %v341, %v372
      %v443 = vmul.f32 %v341, %v376
      %v444 = vmul.f32 %v341, %v380
      %446 = vset.pattern.permute.xlu0 0
      %447 = vperm.xlu0 %446, %v247
      %v448 = vpop.permute.xlu0 %447
      %451 = vset.pattern.permute.xlu0 0
      %452 = vperm.xlu0 %451, %v248
      %v453 = vpop.permute.xlu0 %452
      %456 = vset.pattern.permute.xlu0 0
      %457 = vperm.xlu0 %456, %v249
      %v458 = vpop.permute.xlu0 %457
      %461 = vset.pattern.permute.xlu0 0
      %462 = vperm.xlu0 %461, %v250
      %v463 = vpop.permute.xlu0 %462
      %466 = vset.pattern.permute.xlu0 0
      %467 = vperm.xlu0 %466, %v251
      %v468 = vpop.permute.xlu0 %467
      %471 = vset.pattern.permute.xlu0 0
      %472 = vperm.xlu0 %471, %v252
      %v473 = vpop.permute.xlu0 %472
      %476 = vset.pattern.permute.xlu0 0
      %477 = vperm.xlu0 %476, %v253
      %v478 = vpop.permute.xlu0 %477
      %481 = vset.pattern.permute.xlu0 0
      %482 = vperm.xlu0 %481, %v254
      %v483 = vpop.permute.xlu0 %482
      %486 = vset.pattern.permute.xlu0 0
      %487 = vperm.xlu0 %486, %v255
      %v488 = vpop.permute.xlu0 %487
      %491 = vset.pattern.permute.xlu0 0
      %492 = vperm.xlu0 %491, %v256
      %v493 = vpop.permute.xlu0 %492
      %496 = vset.pattern.permute.xlu0 0
      %497 = vperm.xlu0 %496, %v257
      %v498 = vpop.permute.xlu0 %497
      %501 = vset.pattern.permute.xlu0 0
      %502 = vperm.xlu0 %501, %v258
      %v503 = vpop.permute.xlu0 %502
      %506 = vset.pattern.permute.xlu0 0
      %507 = vperm.xlu0 %506, %v259
      %v508 = vpop.permute.xlu0 %507
      %511 = vset.pattern.permute.xlu0 0
      %512 = vperm.xlu0 %511, %v260
      %v513 = vpop.permute.xlu0 %512
      %516 = vset.pattern.permute.xlu0 0
      %517 = vperm.xlu0 %516, %v261
      %v518 = vpop.permute.xlu0 %517
      %521 = vset.pattern.permute.xlu0 0
      %522 = vperm.xlu0 %521, %v262
      %v523 = vpop.permute.xlu0 %522
      %v525 = vadd.f32 %v448, %v381
      %v526 = vadd.f32 %v448, %v382
      %v527 = vadd.f32 %v448, %v383
      %v528 = vadd.f32 %v448, %v384
      %v529 = vadd.f32 %v453, %v385
      %v530 = vadd.f32 %v453, %v386
      %v531 = vadd.f32 %v453, %v387
      %v532 = vadd.f32 %v453, %v388
      %v533 = vadd.f32 %v458, %v389
      %v534 = vadd.f32 %v458, %v390
      %v535 = vadd.f32 %v458, %v391
      %v536 = vadd.f32 %v458, %v392
      %v537 = vadd.f32 %v463, %v393
      %v538 = vadd.f32 %v463, %v394
      %v539 = vadd.f32 %v463, %v395
      %v540 = vadd.f32 %v463, %v396
      %v541 = vadd.f32 %v468, %v397
      %v542 = vadd.f32 %v468, %v398
      %v543 = vadd.f32 %v468, %v399
      %v544 = vadd.f32 %v468, %v400
      %v545 = vadd.f32 %v473, %v401
      %v546 = vadd.f32 %v473, %v402
      %v547 = vadd.f32 %v473, %v403
      %v548 = vadd.f32 %v473, %v404
      %v549 = vadd.f32 %v478, %v405
      %v550 = vadd.f32 %v478, %v406
      %v551 = vadd.f32 %v478, %v407
      %v552 = vadd.f32 %v478, %v408
      %v553 = vadd.f32 %v483, %v409
      %v554 = vadd.f32 %v483, %v410
      %v555 = vadd.f32 %v483, %v411
      %v556 = vadd.f32 %v483, %v412
      %v557 = vadd.f32 %v488, %v413
      %v558 = vadd.f32 %v488, %v414
      %v559 = vadd.f32 %v488, %v415
      %v560 = vadd.f32 %v488, %v416
      %v561 = vadd.f32 %v493, %v417
      %v562 = vadd.f32 %v493, %v418
      %v563 = vadd.f32 %v493, %v419
      %v564 = vadd.f32 %v493, %v420
      %v565 = vadd.f32 %v498, %v421
      %v566 = vadd.f32 %v498, %v422
      %v567 = vadd.f32 %v498, %v423
      %v568 = vadd.f32 %v498, %v424
      %v569 = vadd.f32 %v503, %v425
      %v570 = vadd.f32 %v503, %v426
      %v571 = vadd.f32 %v503, %v427
      %v572 = vadd.f32 %v503, %v428
      %v573 = vadd.f32 %v508, %v429
      %v574 = vadd.f32 %v508, %v430
      %v575 = vadd.f32 %v508, %v431
      %v576 = vadd.f32 %v508, %v432
      %v577 = vadd.f32 %v513, %v433
      %v578 = vadd.f32 %v513, %v434
      %v579 = vadd.f32 %v513, %v435
      %v580 = vadd.f32 %v513, %v436
      %v581 = vadd.f32 %v518, %v437
      %v582 = vadd.f32 %v518, %v438
      %v583 = vadd.f32 %v518, %v439
      %v584 = vadd.f32 %v518, %v440
      %v585 = vadd.f32 %v523, %v441
      %v586 = vadd.f32 %v523, %v442
      %v587 = vadd.f32 %v523, %v443
      %v588 = vadd.f32 %v523, %v444
      %589 = vset.pattern.permute.xlu0 1
      %590 = vperm.xlu0 %589, %v231
      %v591 = vpop.permute.xlu0 %590
      %593 = vset.pattern.permute.xlu0 1
      %594 = vperm.xlu0 %593, %v232
      %v595 = vpop.permute.xlu0 %594
      %597 = vset.pattern.permute.xlu0 1
      %598 = vperm.xlu0 %597, %v233
      %v599 = vpop.permute.xlu0 %598
      %601 = vset.pattern.permute.xlu0 1
      %602 = vperm.xlu0 %601, %v234
      %v603 = vpop.permute.xlu0 %602
      %605 = vset.pattern.permute.xlu0 1
      %606 = vperm.xlu0 %605, %v235
      %v607 = vpop.permute.xlu0 %606
      %609 = vset.pattern.permute.xlu0 1
      %610 = vperm.xlu0 %609, %v236
      %v611 = vpop.permute.xlu0 %610
      %613 = vset.pattern.permute.xlu0 1
      %614 = vperm.xlu0 %613, %v237
      %v615 = vpop.permute.xlu0 %614
      %617 = vset.pattern.permute.xlu0 1
      %618 = vperm.xlu0 %617, %v238
      %v619 = vpop.permute.xlu0 %618
      %621 = vset.pattern.permute.xlu0 1
      %622 = vperm.xlu0 %621, %v239
      %v623 = vpop.permute.xlu0 %622
      %625 = vset.pattern.permute.xlu0 1
      %626 = vperm.xlu0 %625, %v240
      %v627 = vpop.permute.xlu0 %626
      %629 = vset.pattern.permute.xlu0 1
      %630 = vperm.xlu0 %629, %v241
      %v631 = vpop.permute.xlu0 %630
      %633 = vset.pattern.permute.xlu0 1
      %634 = vperm.xlu0 %633, %v242
      %v635 = vpop.permute.xlu0 %634
      %637 = vset.pattern.permute.xlu0 1
      %638 = vperm.xlu0 %637, %v243
      %v639 = vpop.permute.xlu0 %638
      %641 = vset.pattern.permute.xlu0 1
      %642 = vperm.xlu0 %641, %v244
      %v643 = vpop.permute.xlu0 %642
      %645 = vset.pattern.permute.xlu0 1
      %646 = vperm.xlu0 %645, %v245
      %v647 = vpop.permute.xlu0 %646
      %649 = vset.pattern.permute.xlu0 1
      %650 = vperm.xlu0 %649, %v246
      %v651 = vpop.permute.xlu0 %650
      %v653 = vlaneseq
      %v654 = vshrl.u32 %v653, 7
      %v655 = vsub.s32 1, %v654
      %v656 = vrot.slane %v229, %v655
      %v657 = vlaneseq
      %v658 = vshrl.u32 %v657, 7
      %v659 = vsub.s32 5, %v658
      %v660 = vrot.slane %v229, %v659
      %v661 = vlaneseq
      %v662 = vshrl.u32 %v661, 7
      %v663 = vsub.s32 1, %v662
      %v664 = vrot.slane %v230, %v663
      %v665 = vlaneseq
      %v666 = vshrl.u32 %v665, 7
      %v667 = vsub.s32 5, %v666
      %v668 = vrot.slane %v230, %v667
      %v673 = vlaneseq
      %v674 = vshrl.u32 %v673, 7
      %v675 = vsub.s32 1, %v674
      %v676 = vrot.slane %v656, %v675
      %v677 = vlaneseq
      %v678 = vshrl.u32 %v677, 7
      %v679 = vsub.s32 1, %v678
      %v680 = vrot.slane %v660, %v679
      %v681 = vlaneseq
      %v682 = vshrl.u32 %v681, 7
      %v683 = vsub.s32 1, %v682
      %v684 = vrot.slane %v664, %v683
      %v685 = vlaneseq
      %v686 = vshrl.u32 %v685, 7
      %v687 = vsub.s32 1, %v686
      %v688 = vrot.slane %v668, %v687
      %v689 = vmul.f32 %v591, %v676
      %v690 = vmul.f32 %v591, %v680
      %v691 = vmul.f32 %v591, %v684
      %v692 = vmul.f32 %v591, %v688
      %v693 = vmul.f32 %v595, %v676
      %v694 = vmul.f32 %v595, %v680
      %v695 = vmul.f32 %v595, %v684
      %v696 = vmul.f32 %v595, %v688
      %v697 = vmul.f32 %v599, %v676
      %v698 = vmul.f32 %v599, %v680
      %v699 = vmul.f32 %v599, %v684
      %v700 = vmul.f32 %v599, %v688
      %v701 = vmul.f32 %v603, %v676
      %v702 = vmul.f32 %v603, %v680
      %v703 = vmul.f32 %v603, %v684
      %v704 = vmul.f32 %v603, %v688
      %v705 = vmul.f32 %v607, %v676
      %v706 = vmul.f32 %v607, %v680
      %v707 = vmul.f32 %v607, %v684
      %v708 = vmul.f32 %v607, %v688
      %v709 = vmul.f32 %v611, %v676
      %v710 = vmul.f32 %v611, %v680
      %v711 = vmul.f32 %v611, %v684
      %v712 = vmul.f32 %v611, %v688
      %v713 = vmul.f32 %v615, %v676
      %v714 = vmul.f32 %v615, %v680
      %v715 = vmul.f32 %v615, %v684
      %v716 = vmul.f32 %v615, %v688
      %v717 = vmul.f32 %v619, %v676
      %v718 = vmul.f32 %v619, %v680
      %v719 = vmul.f32 %v619, %v684
      %v720 = vmul.f32 %v619, %v688
      %v721 = vmul.f32 %v623, %v676
      %v722 = vmul.f32 %v623, %v680
      %v723 = vmul.f32 %v623, %v684
      %v724 = vmul.f32 %v623, %v688
      %v725 = vmul.f32 %v627, %v676
      %v726 = vmul.f32 %v627, %v680
      %v727 = vmul.f32 %v627, %v684
      %v728 = vmul.f32 %v627, %v688
      %v729 = vmul.f32 %v631, %v676
      %v730 = vmul.f32 %v631, %v680
      %v731 = vmul.f32 %v631, %v684
      %v732 = vmul.f32 %v631, %v688
      %v733 = vmul.f32 %v635, %v676
      %v734 = vmul.f32 %v635, %v680
      %v735 = vmul.f32 %v635, %v684
      %v736 = vmul.f32 %v635, %v688
      %v737 = vmul.f32 %v639, %v676
      %v738 = vmul.f32 %v639, %v680
      %v739 = vmul.f32 %v639, %v684
      %v740 = vmul.f32 %v639, %v688
      %v741 = vmul.f32 %v643, %v676
      %v742 = vmul.f32 %v643, %v680
      %v743 = vmul.f32 %v643, %v684
      %v744 = vmul.f32 %v643, %v688
      %v745 = vmul.f32 %v647, %v676
      %v746 = vmul.f32 %v647, %v680
      %v747 = vmul.f32 %v647, %v684
      %v748 = vmul.f32 %v647, %v688
      %v749 = vmul.f32 %v651, %v676
      %v750 = vmul.f32 %v651, %v680
      %v751 = vmul.f32 %v651, %v684
      %v752 = vmul.f32 %v651, %v688
      %v753 = vadd.f32 %v525, %v689
      %v754 = vadd.f32 %v526, %v690
      %v755 = vadd.f32 %v527, %v691
      %v756 = vadd.f32 %v528, %v692
      %v757 = vadd.f32 %v529, %v693
      %v758 = vadd.f32 %v530, %v694
      %v759 = vadd.f32 %v531, %v695
      %v760 = vadd.f32 %v532, %v696
      %v761 = vadd.f32 %v533, %v697
      %v762 = vadd.f32 %v534, %v698
      %v763 = vadd.f32 %v535, %v699
      %v764 = vadd.f32 %v536, %v700
      %v765 = vadd.f32 %v537, %v701
      %v766 = vadd.f32 %v538, %v702
      %v767 = vadd.f32 %v539, %v703
      %v768 = vadd.f32 %v540, %v704
      %v769 = vadd.f32 %v541, %v705
      %v770 = vadd.f32 %v542, %v706
      %v771 = vadd.f32 %v543, %v707
      %v772 = vadd.f32 %v544, %v708
      %v773 = vadd.f32 %v545, %v709
      %v774 = vadd.f32 %v546, %v710
      %v775 = vadd.f32 %v547, %v711
      %v776 = vadd.f32 %v548, %v712
      %v777 = vadd.f32 %v549, %v713
      %v778 = vadd.f32 %v550, %v714
      %v779 = vadd.f32 %v551, %v715
      %v780 = vadd.f32 %v552, %v716
      %v781 = vadd.f32 %v553, %v717
      %v782 = vadd.f32 %v554, %v718
      %v783 = vadd.f32 %v555, %v719
      %v784 = vadd.f32 %v556, %v720
      %v785 = vadd.f32 %v557, %v721
      %v786 = vadd.f32 %v558, %v722
      %v787 = vadd.f32 %v559, %v723
      %v788 = vadd.f32 %v560, %v724
      %v789 = vadd.f32 %v561, %v725
      %v790 = vadd.f32 %v562, %v726
      %v791 = vadd.f32 %v563, %v727
      %v792 = vadd.f32 %v564, %v728
      %v793 = vadd.f32 %v565, %v729
      %v794 = vadd.f32 %v566, %v730
      %v795 = vadd.f32 %v567, %v731
      %v796 = vadd.f32 %v568, %v732
      %v797 = vadd.f32 %v569, %v733
      %v798 = vadd.f32 %v570, %v734
      %v799 = vadd.f32 %v571, %v735
      %v800 = vadd.f32 %v572, %v736
      %v801 = vadd.f32 %v573, %v737
      %v802 = vadd.f32 %v574, %v738
      %v803 = vadd.f32 %v575, %v739
      %v804 = vadd.f32 %v576, %v740
      %v805 = vadd.f32 %v577, %v741
      %v806 = vadd.f32 %v578, %v742
      %v807 = vadd.f32 %v579, %v743
      %v808 = vadd.f32 %v580, %v744
      %v809 = vadd.f32 %v581, %v745
      %v810 = vadd.f32 %v582, %v746
      %v811 = vadd.f32 %v583, %v747
      %v812 = vadd.f32 %v584, %v748
      %v813 = vadd.f32 %v585, %v749
      %v814 = vadd.f32 %v586, %v750
      %v815 = vadd.f32 %v587, %v751
      %v816 = vadd.f32 %v588, %v752
      %817 = vset.pattern.permute.xlu0 2
      %818 = vperm.xlu0 %817, %v231
      %v819 = vpop.permute.xlu0 %818
      %821 = vset.pattern.permute.xlu0 2
      %822 = vperm.xlu0 %821, %v232
      %v823 = vpop.permute.xlu0 %822
      %825 = vset.pattern.permute.xlu0 2
      %826 = vperm.xlu0 %825, %v233
      %v827 = vpop.permute.xlu0 %826
      %829 = vset.pattern.permute.xlu0 2
      %830 = vperm.xlu0 %829, %v234
      %v831 = vpop.permute.xlu0 %830
      %833 = vset.pattern.permute.xlu0 2
      %834 = vperm.xlu0 %833, %v235
      %v835 = vpop.permute.xlu0 %834
      %837 = vset.pattern.permute.xlu0 2
      %838 = vperm.xlu0 %837, %v236
      %v839 = vpop.permute.xlu0 %838
      %841 = vset.pattern.permute.xlu0 2
      %842 = vperm.xlu0 %841, %v237
      %v843 = vpop.permute.xlu0 %842
      %845 = vset.pattern.permute.xlu0 2
      %846 = vperm.xlu0 %845, %v238
      %v847 = vpop.permute.xlu0 %846
      %849 = vset.pattern.permute.xlu0 2
      %850 = vperm.xlu0 %849, %v239
      %v851 = vpop.permute.xlu0 %850
      %853 = vset.pattern.permute.xlu0 2
      %854 = vperm.xlu0 %853, %v240
      %v855 = vpop.permute.xlu0 %854
      %857 = vset.pattern.permute.xlu0 2
      %858 = vperm.xlu0 %857, %v241
      %v859 = vpop.permute.xlu0 %858
      %861 = vset.pattern.permute.xlu0 2
      %862 = vperm.xlu0 %861, %v242
      %v863 = vpop.permute.xlu0 %862
      %865 = vset.pattern.permute.xlu0 2
      %866 = vperm.xlu0 %865, %v243
      %v867 = vpop.permute.xlu0 %866
      %869 = vset.pattern.permute.xlu0 2
      %870 = vperm.xlu0 %869, %v244
      %v871 = vpop.permute.xlu0 %870
      %873 = vset.pattern.permute.xlu0 2
      %874 = vperm.xlu0 %873, %v245
      %v875 = vpop.permute.xlu0 %874
      %877 = vset.pattern.permute.xlu0 2
      %878 = vperm.xlu0 %877, %v246
      %v879 = vpop.permute.xlu0 %878
      %v881 = vlaneseq
      %v882 = vshrl.u32 %v881, 7
      %v883 = vsub.s32 2, %v882
      %v884 = vrot.slane %v229, %v883
      %v885 = vlaneseq
      %v886 = vshrl.u32 %v885, 7
      %v887 = vsub.s32 6, %v886
      %v888 = vrot.slane %v229, %v887
      %v889 = vlaneseq
      %v890 = vshrl.u32 %v889, 7
      %v891 = vsub.s32 2, %v890
      %v892 = vrot.slane %v230, %v891
      %v893 = vlaneseq
      %v894 = vshrl.u32 %v893, 7
      %v895 = vsub.s32 6, %v894
      %v896 = vrot.slane %v230, %v895
      %v901 = vlaneseq
      %v902 = vshrl.u32 %v901, 7
      %v903 = vsub.s32 2, %v902
      %v904 = vrot.slane %v884, %v903
      %v905 = vlaneseq
      %v906 = vshrl.u32 %v905, 7
      %v907 = vsub.s32 2, %v906
      %v908 = vrot.slane %v888, %v907
      %v909 = vlaneseq
      %v910 = vshrl.u32 %v909, 7
      %v911 = vsub.s32 2, %v910
      %v912 = vrot.slane %v892, %v911
      %v913 = vlaneseq
      %v914 = vshrl.u32 %v913, 7
      %v915 = vsub.s32 2, %v914
      %v916 = vrot.slane %v896, %v915
      %v917 = vmul.f32 %v819, %v904
      %v918 = vmul.f32 %v819, %v908
      %v919 = vmul.f32 %v819, %v912
      %v920 = vmul.f32 %v819, %v916
      %v921 = vmul.f32 %v823, %v904
      %v922 = vmul.f32 %v823, %v908
      %v923 = vmul.f32 %v823, %v912
      %v924 = vmul.f32 %v823, %v916
      %v925 = vmul.f32 %v827, %v904
      %v926 = vmul.f32 %v827, %v908
      %v927 = vmul.f32 %v827, %v912
      %v928 = vmul.f32 %v827, %v916
      %v929 = vmul.f32 %v831, %v904
      %v930 = vmul.f32 %v831, %v908
      %v931 = vmul.f32 %v831, %v912
      %v932 = vmul.f32 %v831, %v916
      %v933 = vmul.f32 %v835, %v904
      %v934 = vmul.f32 %v835, %v908
      %v935 = vmul.f32 %v835, %v912
      %v936 = vmul.f32 %v835, %v916
      %v937 = vmul.f32 %v839, %v904
      %v938 = vmul.f32 %v839, %v908
      %v939 = vmul.f32 %v839, %v912
      %v940 = vmul.f32 %v839, %v916
      %v941 = vmul.f32 %v843, %v904
      %v942 = vmul.f32 %v843, %v908
      %v943 = vmul.f32 %v843, %v912
      %v944 = vmul.f32 %v843, %v916
      %v945 = vmul.f32 %v847, %v904
      %v946 = vmul.f32 %v847, %v908
      %v947 = vmul.f32 %v847, %v912
      %v948 = vmul.f32 %v847, %v916
      %v949 = vmul.f32 %v851, %v904
      %v950 = vmul.f32 %v851, %v908
      %v951 = vmul.f32 %v851, %v912
      %v952 = vmul.f32 %v851, %v916
      %v953 = vmul.f32 %v855, %v904
      %v954 = vmul.f32 %v855, %v908
      %v955 = vmul.f32 %v855, %v912
      %v956 = vmul.f32 %v855, %v916
      %v957 = vmul.f32 %v859, %v904
      %v958 = vmul.f32 %v859, %v908
      %v959 = vmul.f32 %v859, %v912
      %v960 = vmul.f32 %v859, %v916
      %v961 = vmul.f32 %v863, %v904
      %v962 = vmul.f32 %v863, %v908
      %v963 = vmul.f32 %v863, %v912
      %v964 = vmul.f32 %v863, %v916
      %v965 = vmul.f32 %v867, %v904
      %v966 = vmul.f32 %v867, %v908
      %v967 = vmul.f32 %v867, %v912
      %v968 = vmul.f32 %v867, %v916
      %v969 = vmul.f32 %v871, %v904
      %v970 = vmul.f32 %v871, %v908
      %v971 = vmul.f32 %v871, %v912
      %v972 = vmul.f32 %v871, %v916
      %v973 = vmul.f32 %v875, %v904
      %v974 = vmul.f32 %v875, %v908
      %v975 = vmul.f32 %v875, %v912
      %v976 = vmul.f32 %v875, %v916
      %v977 = vmul.f32 %v879, %v904
      %v978 = vmul.f32 %v879, %v908
      %v979 = vmul.f32 %v879, %v912
      %v980 = vmul.f32 %v879, %v916
      %v981 = vadd.f32 %v753, %v917
      %v982 = vadd.f32 %v754, %v918
      %v983 = vadd.f32 %v755, %v919
      %v984 = vadd.f32 %v756, %v920
      %v985 = vadd.f32 %v757, %v921
      %v986 = vadd.f32 %v758, %v922
      %v987 = vadd.f32 %v759, %v923
      %v988 = vadd.f32 %v760, %v924
      %v989 = vadd.f32 %v761, %v925
      %v990 = vadd.f32 %v762, %v926
      %v991 = vadd.f32 %v763, %v927
      %v992 = vadd.f32 %v764, %v928
      %v993 = vadd.f32 %v765, %v929
      %v994 = vadd.f32 %v766, %v930
      %v995 = vadd.f32 %v767, %v931
      %v996 = vadd.f32 %v768, %v932
      %v997 = vadd.f32 %v769, %v933
      %v998 = vadd.f32 %v770, %v934
      %v999 = vadd.f32 %v771, %v935
      %v1000 = vadd.f32 %v772, %v936
      %v1001 = vadd.f32 %v773, %v937
      %v1002 = vadd.f32 %v774, %v938
      %v1003 = vadd.f32 %v775, %v939
      %v1004 = vadd.f32 %v776, %v940
      %v1005 = vadd.f32 %v777, %v941
      %v1006 = vadd.f32 %v778, %v942
      %v1007 = vadd.f32 %v779, %v943
      %v1008 = vadd.f32 %v780, %v944
      %v1009 = vadd.f32 %v781, %v945
      %v1010 = vadd.f32 %v782, %v946
      %v1011 = vadd.f32 %v783, %v947
      %v1012 = vadd.f32 %v784, %v948
      %v1013 = vadd.f32 %v785, %v949
      %v1014 = vadd.f32 %v786, %v950
      %v1015 = vadd.f32 %v787, %v951
      %v1016 = vadd.f32 %v788, %v952
      %v1017 = vadd.f32 %v789, %v953
      %v1018 = vadd.f32 %v790, %v954
      %v1019 = vadd.f32 %v791, %v955
      %v1020 = vadd.f32 %v792, %v956
      %v1021 = vadd.f32 %v793, %v957
      %v1022 = vadd.f32 %v794, %v958
      %v1023 = vadd.f32 %v795, %v959
      %v1024 = vadd.f32 %v796, %v960
      %v1025 = vadd.f32 %v797, %v961
      %v1026 = vadd.f32 %v798, %v962
      %v1027 = vadd.f32 %v799, %v963
      %v1028 = vadd.f32 %v800, %v964
      %v1029 = vadd.f32 %v801, %v965
      %v1030 = vadd.f32 %v802, %v966
      %v1031 = vadd.f32 %v803, %v967
      %v1032 = vadd.f32 %v804, %v968
      %v1033 = vadd.f32 %v805, %v969
      %v1034 = vadd.f32 %v806, %v970
      %v1035 = vadd.f32 %v807, %v971
      %v1036 = vadd.f32 %v808, %v972
      %v1037 = vadd.f32 %v809, %v973
      %v1038 = vadd.f32 %v810, %v974
      %v1039 = vadd.f32 %v811, %v975
      %v1040 = vadd.f32 %v812, %v976
      %v1041 = vadd.f32 %v813, %v977
      %v1042 = vadd.f32 %v814, %v978
      %v1043 = vadd.f32 %v815, %v979
      %v1044 = vadd.f32 %v816, %v980
      %1045 = vset.pattern.permute.xlu0 3
      %1046 = vperm.xlu0 %1045, %v231
      %v1047 = vpop.permute.xlu0 %1046
      %1049 = vset.pattern.permute.xlu0 3
      %1050 = vperm.xlu0 %1049, %v232
      %v1051 = vpop.permute.xlu0 %1050
      %1053 = vset.pattern.permute.xlu0 3
      %1054 = vperm.xlu0 %1053, %v233
      %v1055 = vpop.permute.xlu0 %1054
      %1057 = vset.pattern.permute.xlu0 3
      %1058 = vperm.xlu0 %1057, %v234
      %v1059 = vpop.permute.xlu0 %1058
      %1061 = vset.pattern.permute.xlu0 3
      %1062 = vperm.xlu0 %1061, %v235
      %v1063 = vpop.permute.xlu0 %1062
      %1065 = vset.pattern.permute.xlu0 3
      %1066 = vperm.xlu0 %1065, %v236
      %v1067 = vpop.permute.xlu0 %1066
      %1069 = vset.pattern.permute.xlu0 3
      %1070 = vperm.xlu0 %1069, %v237
      %v1071 = vpop.permute.xlu0 %1070
      %1073 = vset.pattern.permute.xlu0 3
      %1074 = vperm.xlu0 %1073, %v238
      %v1075 = vpop.permute.xlu0 %1074
      %1077 = vset.pattern.permute.xlu0 3
      %1078 = vperm.xlu0 %1077, %v239
      %v1079 = vpop.permute.xlu0 %1078
      %1081 = vset.pattern.permute.xlu0 3
      %1082 = vperm.xlu0 %1081, %v240
      %v1083 = vpop.permute.xlu0 %1082
      %1085 = vset.pattern.permute.xlu0 3
      %1086 = vperm.xlu0 %1085, %v241
      %v1087 = vpop.permute.xlu0 %1086
      %1089 = vset.pattern.permute.xlu0 3
      %1090 = vperm.xlu0 %1089, %v242
      %v1091 = vpop.permute.xlu0 %1090
      %1093 = vset.pattern.permute.xlu0 3
      %1094 = vperm.xlu0 %1093, %v243
      %v1095 = vpop.permute.xlu0 %1094
      %1097 = vset.pattern.permute.xlu0 3
      %1098 = vperm.xlu0 %1097, %v244
      %v1099 = vpop.permute.xlu0 %1098
      %1101 = vset.pattern.permute.xlu0 3
      %1102 = vperm.xlu0 %1101, %v245
      %v1103 = vpop.permute.xlu0 %1102
      %1105 = vset.pattern.permute.xlu0 3
      %1106 = vperm.xlu0 %1105, %v246
      %v1107 = vpop.permute.xlu0 %1106
      %v1109 = vlaneseq
      %v1110 = vshrl.u32 %v1109, 7
      %v1111 = vsub.s32 3, %v1110
      %v1112 = vrot.slane %v229, %v1111
      %v1113 = vlaneseq
      %v1114 = vshrl.u32 %v1113, 7
      %v1115 = vsub.s32 7, %v1114
      %v1116 = vrot.slane %v229, %v1115
      %v1117 = vlaneseq
      %v1118 = vshrl.u32 %v1117, 7
      %v1119 = vsub.s32 3, %v1118
      %v1120 = vrot.slane %v230, %v1119
      %v1121 = vlaneseq
      %v1122 = vshrl.u32 %v1121, 7
      %v1123 = vsub.s32 7, %v1122
      %v1124 = vrot.slane %v230, %v1123
      %v1129 = vlaneseq
      %v1130 = vshrl.u32 %v1129, 7
      %v1131 = vsub.s32 3, %v1130
      %v1132 = vrot.slane %v1112, %v1131
      %v1133 = vlaneseq
      %v1134 = vshrl.u32 %v1133, 7
      %v1135 = vsub.s32 3, %v1134
      %v1136 = vrot.slane %v1116, %v1135
      %v1137 = vlaneseq
      %v1138 = vshrl.u32 %v1137, 7
      %v1139 = vsub.s32 3, %v1138
      %v1140 = vrot.slane %v1120, %v1139
      %v1141 = vlaneseq
      %v1142 = vshrl.u32 %v1141, 7
      %v1143 = vsub.s32 3, %v1142
      %v1144 = vrot.slane %v1124, %v1143
      %v1145 = vmul.f32 %v1047, %v1132
      %v1146 = vmul.f32 %v1047, %v1136
      %v1147 = vmul.f32 %v1047, %v1140
      %v1148 = vmul.f32 %v1047, %v1144
      %v1149 = vmul.f32 %v1051, %v1132
      %v1150 = vmul.f32 %v1051, %v1136
      %v1151 = vmul.f32 %v1051, %v1140
      %v1152 = vmul.f32 %v1051, %v1144
      %v1153 = vmul.f32 %v1055, %v1132
      %v1154 = vmul.f32 %v1055, %v1136
      %v1155 = vmul.f32 %v1055, %v1140
      %v1156 = vmul.f32 %v1055, %v1144
      %v1157 = vmul.f32 %v1059, %v1132
      %v1158 = vmul.f32 %v1059, %v1136
      %v1159 = vmul.f32 %v1059, %v1140
      %v1160 = vmul.f32 %v1059, %v1144
      %v1161 = vmul.f32 %v1063, %v1132
      %v1162 = vmul.f32 %v1063, %v1136
      %v1163 = vmul.f32 %v1063, %v1140
      %v1164 = vmul.f32 %v1063, %v1144
      %v1165 = vmul.f32 %v1067, %v1132
      %v1166 = vmul.f32 %v1067, %v1136
      %v1167 = vmul.f32 %v1067, %v1140
      %v1168 = vmul.f32 %v1067, %v1144
      %v1169 = vmul.f32 %v1071, %v1132
      %v1170 = vmul.f32 %v1071, %v1136
      %v1171 = vmul.f32 %v1071, %v1140
      %v1172 = vmul.f32 %v1071, %v1144
      %v1173 = vmul.f32 %v1075, %v1132
      %v1174 = vmul.f32 %v1075, %v1136
      %v1175 = vmul.f32 %v1075, %v1140
      %v1176 = vmul.f32 %v1075, %v1144
      %v1177 = vmul.f32 %v1079, %v1132
      %v1178 = vmul.f32 %v1079, %v1136
      %v1179 = vmul.f32 %v1079, %v1140
      %v1180 = vmul.f32 %v1079, %v1144
      %v1181 = vmul.f32 %v1083, %v1132
      %v1182 = vmul.f32 %v1083, %v1136
      %v1183 = vmul.f32 %v1083, %v1140
      %v1184 = vmul.f32 %v1083, %v1144
      %v1185 = vmul.f32 %v1087, %v1132
      %v1186 = vmul.f32 %v1087, %v1136
      %v1187 = vmul.f32 %v1087, %v1140
      %v1188 = vmul.f32 %v1087, %v1144
      %v1189 = vmul.f32 %v1091, %v1132
      %v1190 = vmul.f32 %v1091, %v1136
      %v1191 = vmul.f32 %v1091, %v1140
      %v1192 = vmul.f32 %v1091, %v1144
      %v1193 = vmul.f32 %v1095, %v1132
      %v1194 = vmul.f32 %v1095, %v1136
      %v1195 = vmul.f32 %v1095, %v1140
      %v1196 = vmul.f32 %v1095, %v1144
      %v1197 = vmul.f32 %v1099, %v1132
      %v1198 = vmul.f32 %v1099, %v1136
      %v1199 = vmul.f32 %v1099, %v1140
      %v1200 = vmul.f32 %v1099, %v1144
      %v1201 = vmul.f32 %v1103, %v1132
      %v1202 = vmul.f32 %v1103, %v1136
      %v1203 = vmul.f32 %v1103, %v1140
      %v1204 = vmul.f32 %v1103, %v1144
      %v1205 = vmul.f32 %v1107, %v1132
      %v1206 = vmul.f32 %v1107, %v1136
      %v1207 = vmul.f32 %v1107, %v1140
      %v1208 = vmul.f32 %v1107, %v1144
      %v1209 = vadd.f32 %v981, %v1145
      %v1210 = vadd.f32 %v982, %v1146
      %v1211 = vadd.f32 %v983, %v1147
      %v1212 = vadd.f32 %v984, %v1148
      %v1213 = vadd.f32 %v985, %v1149
      %v1214 = vadd.f32 %v986, %v1150
      %v1215 = vadd.f32 %v987, %v1151
      %v1216 = vadd.f32 %v988, %v1152
      %v1217 = vadd.f32 %v989, %v1153
      %v1218 = vadd.f32 %v990, %v1154
      %v1219 = vadd.f32 %v991, %v1155
      %v1220 = vadd.f32 %v992, %v1156
      %v1221 = vadd.f32 %v993, %v1157
      %v1222 = vadd.f32 %v994, %v1158
      %v1223 = vadd.f32 %v995, %v1159
      %v1224 = vadd.f32 %v996, %v1160
      %v1225 = vadd.f32 %v997, %v1161
      %v1226 = vadd.f32 %v998, %v1162
      %v1227 = vadd.f32 %v999, %v1163
      %v1228 = vadd.f32 %v1000, %v1164
      %v1229 = vadd.f32 %v1001, %v1165
      %v1230 = vadd.f32 %v1002, %v1166
      %v1231 = vadd.f32 %v1003, %v1167
      %v1232 = vadd.f32 %v1004, %v1168
      %v1233 = vadd.f32 %v1005, %v1169
      %v1234 = vadd.f32 %v1006, %v1170
      %v1235 = vadd.f32 %v1007, %v1171
      %v1236 = vadd.f32 %v1008, %v1172
      %v1237 = vadd.f32 %v1009, %v1173
      %v1238 = vadd.f32 %v1010, %v1174
      %v1239 = vadd.f32 %v1011, %v1175
      %v1240 = vadd.f32 %v1012, %v1176
      %v1241 = vadd.f32 %v1013, %v1177
      %v1242 = vadd.f32 %v1014, %v1178
      %v1243 = vadd.f32 %v1015, %v1179
      %v1244 = vadd.f32 %v1016, %v1180
      %v1245 = vadd.f32 %v1017, %v1181
      %v1246 = vadd.f32 %v1018, %v1182
      %v1247 = vadd.f32 %v1019, %v1183
      %v1248 = vadd.f32 %v1020, %v1184
      %v1249 = vadd.f32 %v1021, %v1185
      %v1250 = vadd.f32 %v1022, %v1186
      %v1251 = vadd.f32 %v1023, %v1187
      %v1252 = vadd.f32 %v1024, %v1188
      %v1253 = vadd.f32 %v1025, %v1189
      %v1254 = vadd.f32 %v1026, %v1190
      %v1255 = vadd.f32 %v1027, %v1191
      %v1256 = vadd.f32 %v1028, %v1192
      %v1257 = vadd.f32 %v1029, %v1193
      %v1258 = vadd.f32 %v1030, %v1194
      %v1259 = vadd.f32 %v1031, %v1195
      %v1260 = vadd.f32 %v1032, %v1196
      %v1261 = vadd.f32 %v1033, %v1197
      %v1262 = vadd.f32 %v1034, %v1198
      %v1263 = vadd.f32 %v1035, %v1199
      %v1264 = vadd.f32 %v1036, %v1200
      %v1265 = vadd.f32 %v1037, %v1201
      %v1266 = vadd.f32 %v1038, %v1202
      %v1267 = vadd.f32 %v1039, %v1203
      %v1268 = vadd.f32 %v1040, %v1204
      %v1269 = vadd.f32 %v1041, %v1205
      %v1270 = vadd.f32 %v1042, %v1206
      %v1271 = vadd.f32 %v1043, %v1207
      %v1272 = vadd.f32 %v1044, %v1208
      %v1273 = vmax.f32 %v1209, 0.0
      %v1274 = vmax.f32 %v1210, 0.0
      %v1275 = vmax.f32 %v1211, 0.0
      %v1276 = vmax.f32 %v1212, 0.0
      %v1277 = vmax.f32 %v1213, 0.0
      %v1278 = vmax.f32 %v1214, 0.0
      %v1279 = vmax.f32 %v1215, 0.0
      %v1280 = vmax.f32 %v1216, 0.0
      %v1281 = vmax.f32 %v1217, 0.0
      %v1282 = vmax.f32 %v1218, 0.0
      %v1283 = vmax.f32 %v1219, 0.0
      %v1284 = vmax.f32 %v1220, 0.0
      %v1285 = vmax.f32 %v1221, 0.0
      %v1286 = vmax.f32 %v1222, 0.0
      %v1287 = vmax.f32 %v1223, 0.0
      %v1288 = vmax.f32 %v1224, 0.0
      %v1289 = vmax.f32 %v1225, 0.0
      %v1290 = vmax.f32 %v1226, 0.0
      %v1291 = vmax.f32 %v1227, 0.0
      %v1292 = vmax.f32 %v1228, 0.0
      %v1293 = vmax.f32 %v1229, 0.0
      %v1294 = vmax.f32 %v1230, 0.0
      %v1295 = vmax.f32 %v1231, 0.0
      %v1296 = vmax.f32 %v1232, 0.0
      %v1297 = vmax.f32 %v1233, 0.0
      %v1298 = vmax.f32 %v1234, 0.0
      %v1299 = vmax.f32 %v1235, 0.0
      %v1300 = vmax.f32 %v1236, 0.0
      %v1301 = vmax.f32 %v1237, 0.0
      %v1302 = vmax.f32 %v1238, 0.0
      %v1303 = vmax.f32 %v1239, 0.0
      %v1304 = vmax.f32 %v1240, 0.0
      %v1305 = vmax.f32 %v1241, 0.0
      %v1306 = vmax.f32 %v1242, 0.0
      %v1307 = vmax.f32 %v1243, 0.0
      %v1308 = vmax.f32 %v1244, 0.0
      %v1309 = vmax.f32 %v1245, 0.0
      %v1310 = vmax.f32 %v1246, 0.0
      %v1311 = vmax.f32 %v1247, 0.0
      %v1312 = vmax.f32 %v1248, 0.0
      %v1313 = vmax.f32 %v1249, 0.0
      %v1314 = vmax.f32 %v1250, 0.0
      %v1315 = vmax.f32 %v1251, 0.0
      %v1316 = vmax.f32 %v1252, 0.0
      %v1317 = vmax.f32 %v1253, 0.0
      %v1318 = vmax.f32 %v1254, 0.0
      %v1319 = vmax.f32 %v1255, 0.0
      %v1320 = vmax.f32 %v1256, 0.0
      %v1321 = vmax.f32 %v1257, 0.0
      %v1322 = vmax.f32 %v1258, 0.0
      %v1323 = vmax.f32 %v1259, 0.0
      %v1324 = vmax.f32 %v1260, 0.0
      %v1325 = vmax.f32 %v1261, 0.0
      %v1326 = vmax.f32 %v1262, 0.0
      %v1327 = vmax.f32 %v1263, 0.0
      %v1328 = vmax.f32 %v1264, 0.0
      %v1329 = vmax.f32 %v1265, 0.0
      %v1330 = vmax.f32 %v1266, 0.0
      %v1331 = vmax.f32 %v1267, 0.0
      %v1332 = vmax.f32 %v1268, 0.0
      %v1333 = vmax.f32 %v1269, 0.0
      %v1334 = vmax.f32 %v1270, 0.0
      %v1335 = vmax.f32 %v1271, 0.0
      %v1336 = vmax.f32 %v1272, 0.0
      %v1337 = vld [vmem:[%s3] sm:$0xf]
      %v1338 = vpack.c.bf16 %v1277, %v1273
      %v1339 = vpack.c.bf16 %v1278, %v1274
      %v1340 = vpack.c.bf16 %v1279, %v1275
      %v1341 = vpack.c.bf16 %v1280, %v1276
      %v1342 = vpack.c.bf16 %v1285, %v1281
      %v1343 = vpack.c.bf16 %v1286, %v1282
      %v1344 = vpack.c.bf16 %v1287, %v1283
      %v1345 = vpack.c.bf16 %v1288, %v1284
      %v1346 = vpack.c.bf16 %v1293, %v1289
      %v1347 = vpack.c.bf16 %v1294, %v1290
      %v1348 = vpack.c.bf16 %v1295, %v1291
      %v1349 = vpack.c.bf16 %v1296, %v1292
      %v1350 = vpack.c.bf16 %v1301, %v1297
      %v1351 = vpack.c.bf16 %v1302, %v1298
      %v1352 = vpack.c.bf16 %v1303, %v1299
      %v1353 = vpack.c.bf16 %v1304, %v1300
      %v1354 = vpack.c.bf16 %v1309, %v1305
      %v1355 = vpack.c.bf16 %v1310, %v1306
      %v1356 = vpack.c.bf16 %v1311, %v1307
      %v1357 = vpack.c.bf16 %v1312, %v1308
      %v1358 = vpack.c.bf16 %v1317, %v1313
      %v1359 = vpack.c.bf16 %v1318, %v1314
      %v1360 = vpack.c.bf16 %v1319, %v1315
      %v1361 = vpack.c.bf16 %v1320, %v1316
      %v1362 = vpack.c.bf16 %v1325, %v1321
      %v1363 = vpack.c.bf16 %v1326, %v1322
      %v1364 = vpack.c.bf16 %v1327, %v1323
      %v1365 = vpack.c.bf16 %v1328, %v1324
      %v1366 = vpack.c.bf16 %v1333, %v1329
      %v1367 = vpack.c.bf16 %v1334, %v1330
      %v1368 = vpack.c.bf16 %v1335, %v1331
      %v1369 = vpack.c.bf16 %v1336, %v1332
      %v1370 = vld [vmem:[%s4] sm:$0xff]
      %1372 = vset.pattern.permute.xlu0 0
      %1373 = vperm.xlu0 %1372, %v1370
      %v1374 = vpop.permute.xlu0 %1373
      %1376 = vmatprep.subr.bf16.mxu0 %v1367
      %1377 = vmatpush1.bf16.msra.mxu0 %v1366
      %1378 = vmatprep.subr.bf16.mxu0 %v1363
      %1379 = vmatpush1.bf16.msra.mxu0 %v1362
      %1380 = vmatprep.subr.bf16.mxu0 %v1359
      %1381 = vmatpush1.bf16.msra.mxu0 %v1358
      %1382 = vmatprep.subr.bf16.mxu0 %v1355
      %1383 = vmatpush1.bf16.msra.mxu0 %v1354
      %1384 = vmatprep.subr.bf16.mxu0 %v1351
      %1385 = vmatpush1.bf16.msra.mxu0 %v1350
      %1386 = vmatprep.subr.bf16.mxu0 %v1347
      %1387 = vmatpush1.bf16.msra.mxu0 %v1346
      %1388 = vmatprep.subr.bf16.mxu0 %v1343
      %1389 = vmatpush1.bf16.msra.mxu0 %v1342
      %1390 = vmatprep.subr.bf16.mxu0 %v1339
      %1391 = vmatpush1.bf16.msra.mxu0 %v1338
      %1392 = vmatprep.subr.bf16.mxu0 0
      %1393 = vmatpush2.bf16.msra.mxu0 0
      %1394 = vmatprep.subr.bf16.mxu0 0
      %1395 = vmatpush2.bf16.msra.mxu0 0
      %1396 = vmatprep.subr.bf16.mxu0 0
      %1397 = vmatpush2.bf16.msra.mxu0 0
      %1398 = vmatprep.subr.bf16.mxu0 0
      %1399 = vmatpush2.bf16.msra.mxu0 0
      %1400 = vmatprep.subr.bf16.mxu0 0
      %1401 = vmatpush2.bf16.msra.mxu0 0
      %1402 = vmatprep.subr.bf16.mxu0 0
      %1403 = vmatpush2.bf16.msra.mxu0 0
      %1404 = vmatprep.subr.bf16.mxu0 0
      %1405 = vmatpush2.bf16.msra.mxu0 0
      %1406 = vmatprep.subr.bf16.mxu0 0
      %1407 = vmatpush2.bf16.msra.mxu0 0
      %1408 = vmatprep.mubr.bf16.mxu0 0
      %1409 = vmatmul.mubr.bf16.gmra.mxu0 %v1337
      %v1410 = vpop.f32.mrf.mxu0
      %v1411 = vadd.f32 %v1374, %v1410
      %v1412 = vpop.f32.mrf.mxu0
      %v1413 = vadd.f32 %v1374, %v1412
      %v1414 = vpop.f32.mrf.mxu0
      %v1415 = vpop.f32.mrf.mxu0
      %1416 = vdwg.mxu0
      %1417 = vmatprep.subr.bf16.mxu0 %v1369
      %1418 = vmatpush1.bf16.msra.mxu0 %v1368
      %1419 = vmatprep.subr.bf16.mxu0 %v1365
      %1420 = vmatpush1.bf16.msra.mxu0 %v1364
      %1421 = vmatprep.subr.bf16.mxu0 %v1361
      %1422 = vmatpush1.bf16.msra.mxu0 %v1360
      %1423 = vmatprep.subr.bf16.mxu0 %v1357
      %1424 = vmatpush1.bf16.msra.mxu0 %v1356
      %1425 = vmatprep.subr.bf16.mxu0 %v1353
      %1426 = vmatpush1.bf16.msra.mxu0 %v1352
      %1427 = vmatprep.subr.bf16.mxu0 %v1349
      %1428 = vmatpush1.bf16.msra.mxu0 %v1348
      %1429 = vmatprep.subr.bf16.mxu0 %v1345
      %1430 = vmatpush1.bf16.msra.mxu0 %v1344
      %1431 = vmatprep.subr.bf16.mxu0 %v1341
      %1432 = vmatpush1.bf16.msra.mxu0 %v1340
      %1433 = vmatprep.subr.bf16.mxu0 0
      %1434 = vmatpush2.bf16.msra.mxu0 0
      %1435 = vmatprep.subr.bf16.mxu0 0
      %1436 = vmatpush2.bf16.msra.mxu0 0
      %1437 = vmatprep.subr.bf16.mxu0 0
      %1438 = vmatpush2.bf16.msra.mxu0 0
      %1439 = vmatprep.subr.bf16.mxu0 0
      %1440 = vmatpush2.bf16.msra.mxu0 0
      %1441 = vmatprep.subr.bf16.mxu0 0
      %1442 = vmatpush2.bf16.msra.mxu0 0
      %1443 = vmatprep.subr.bf16.mxu0 0
      %1444 = vmatpush2.bf16.msra.mxu0 0
      %1445 = vmatprep.subr.bf16.mxu0 0
      %1446 = vmatpush2.bf16.msra.mxu0 0
      %1447 = vmatprep.subr.bf16.mxu0 0
      %1448 = vmatpush2.bf16.msra.mxu0 0
      %1449 = vmatprep.mubr.bf16.mxu0 0
      %1450 = vmatmul.mubr.bf16.gmra.mxu0 %v1337
      %v1451 = vpop.f32.mrf.mxu0
      %v1452 = vadd.f32 %v1374, %v1451
      %v1453 = vpop.f32.mrf.mxu0
      %v1454 = vadd.f32 %v1374, %v1453
      %v1455 = vpop.f32.mrf.mxu0
      %v1456 = vpop.f32.mrf.mxu0
      %1457 = vdwg.mxu0
      %v1458 = vrot.slane %v1411, 4
      %v1459 = vmax.f32 %v1411, %v1458
      %v1460 = vrot.slane %v1459, 2
      %v1461 = vmax.f32 %v1459, %v1460
      %v1462 = vrot.slane %v1461, 1
      %v1463 = vmax.f32 %v1461, %v1462
      %v1464 = vrot.slane %v1413, 4
      %v1465 = vmax.f32 %v1413, %v1464
      %v1466 = vrot.slane %v1465, 2
      %v1467 = vmax.f32 %v1465, %v1466
      %v1468 = vrot.slane %v1467, 1
      %v1469 = vmax.f32 %v1467, %v1468
      %v1470 = vrot.slane %v1452, 4
      %v1471 = vmax.f32 %v1452, %v1470
      %v1472 = vrot.slane %v1471, 2
      %v1473 = vmax.f32 %v1471, %v1472
      %v1474 = vrot.slane %v1473, 1
      %v1475 = vmax.f32 %v1473, %v1474
      %v1476 = vrot.slane %v1454, 4
      %v1477 = vmax.f32 %v1454, %v1476
      %v1478 = vrot.slane %v1477, 2
      %v1479 = vmax.f32 %v1477, %v1478
      %v1480 = vrot.slane %v1479, 1
      %v1481 = vmax.f32 %v1479, %v1480
      %v1482 = vsub.f32 %v1411, %v1463
      %v1483 = vsub.f32 %v1413, %v1469
      %v1484 = vsub.f32 %v1452, %v1475
      %v1485 = vsub.f32 %v1454, %v1481
      %v1486 = vmul.f32 %v1482, 1.442695
      %v1487 = vpow.pop %v1486
      %v1488 = vmul.f32 %v1483, 1.442695
      %v1489 = vpow.pop %v1488
      %v1490 = vmul.f32 %v1484, 1.442695
      %v1491 = vpow.pop %v1490
      %v1492 = vmul.f32 %v1485, 1.442695
      %v1493 = vpow.pop %v1492
      %v1494 = vrot.slane %v1487, 4
      %v1495 = vadd.f32 %v1487, %v1494
      %v1496 = vrot.slane %v1495, 2
      %v1497 = vadd.f32 %v1495, %v1496
      %v1498 = vrot.slane %v1497, 1
      %v1499 = vadd.f32 %v1497, %v1498
      %v1500 = vrot.slane %v1489, 4
      %v1501 = vadd.f32 %v1489, %v1500
      %v1502 = vrot.slane %v1501, 2
      %v1503 = vadd.f32 %v1501, %v1502
      %v1504 = vrot.slane %v1503, 1
      %v1505 = vadd.f32 %v1503, %v1504
      %v1506 = vrot.slane %v1491, 4
      %v1507 = vadd.f32 %v1491, %v1506
      %v1508 = vrot.slane %v1507, 2
      %v1509 = vadd.f32 %v1507, %v1508
      %v1510 = vrot.slane %v1509, 1
      %v1511 = vadd.f32 %v1509, %v1510
      %v1512 = vrot.slane %v1493, 4
      %v1513 = vadd.f32 %v1493, %v1512
      %v1514 = vrot.slane %v1513, 2
      %v1515 = vadd.f32 %v1513, %v1514
      %v1516 = vrot.slane %v1515, 1
      %v1517 = vadd.f32 %v1515, %v1516
      %v1518 = vrcp.pop %v1499
      %v1519 = vmul.f32 1.0, %v1518
      %v1520 = vrcp.pop %v1505
      %v1521 = vmul.f32 1.0, %v1520
      %v1522 = vrcp.pop %v1511
      %v1523 = vmul.f32 1.0, %v1522
      %v1524 = vrcp.pop %v1517
      %v1525 = vmul.f32 1.0, %v1524
      %v1526 = vmul.f32 %v1487, %v1519
      %v1527 = vmul.f32 %v1489, %v1521
      %v1528 = vmul.f32 %v1491, %v1523
      %v1529 = vmul.f32 %v1493, %v1525
      %1530 = vst [vmem:[%s226] sm:$0xff] %v1526
      %1531 = vst [vmem:[%s226 + $0x8] sm:$0xff] %v1527
      %1532 = vst [vmem:[%s226 + $0x10] sm:$0xff] %v1528
      %1533 = vst [vmem:[%s226 + $0x18] sm:$0xff] %v1529
      %s1534 = smul.u32 4, %s16
      %p1535 = scmp.lt.s32.totalorder %s1534, 7
      %s1536 = scalar_select %p1535, %s1534, 7
      %s1537 = smul.addr %s1536, 8
      %s1538 = scalar_lea.vmem %s5, %s1537
      // Predicated region
      $region41: #{policy_network_forward.1} parent=39 // pred_check
        %p1539 = pneg %p144
      $region42: #{policy_network_forward.1} parent=39 // pred_check_branch
        %1541 = sbr.rel (%p1539) target = $region44
      $region43: #{policy_network_forward.1} parent=39 // pred_region
        %s1542 = smul.u32 4, %s16
      $region44: #{policy_network_forward.1} parent=39 // pred_fallthru
        _
    $region40: #{policy_network_forward.1} parent=5 // pred_fallthru
      _
    %p1543 = scmp.le.s32.totalorder 2, %s11
    // Predicated region
    $region45: #{policy_network_forward.1} parent=5 // pred_check
      %p1544 = pneg %p1543
    $region46: #{policy_network_forward.1} parent=5 // pred_check_branch
      %1546 = sbr.rel (%p1544) target = $region48
    $region47: #{policy_network_forward.1} parent=5 // pred_region
      %s1547 = ssub.s32 %s11, 2
      // Predicated region
      $region49: #{policy_network_forward.1} parent=47 // pred_check
        %p1548 = pneg %p150
      $region50: #{policy_network_forward.1} parent=47 // pred_check_branch
        %1550 = sbr.rel (%p1548) target = $region52
      $region51: #{policy_network_forward.1} parent=47 // pred_region
        %s1551 = smul.u32 4, %s17
        %p1552 = scmp.lt.s32.totalorder %s1551, 7
        %s1553 = scalar_select %p1552, %s1551, 7
        %s1554 = smul.addr %s1553, 8
        %s1555 = scalar_lea.vmem %s5, %s1554
      $region52: #{policy_network_forward.1} parent=47 // pred_fallthru
        _
    $region48: #{policy_network_forward.1} parent=5 // pred_fallthru
      _
  $region6: #{policy_network_forward.1} parent=0 // loop_footer
    %s15 = sadd.s32 1, %s11
  $region7: #{policy_network_forward.1} parent=0 // loop_footer_branch
    %10 = sbr.rel target = $region3
  $region8: #{policy_network_forward.1} parent=0 // loop_exit
    _

</llo_original>
